<compile_context>
chip_gen: v7x
topology: tpu7x:2x2x1
jax: 0.10.0
libtpu: 0.0.40
codegen_flags: <defaults>
</compile_context>

<pallas_src>
import functools

import jax
import jax.numpy as jnp
from jax.experimental import pallas as pl
from jax.experimental.pallas import tpu as pltpu


def _round_up(x, m):
    return ((x + m - 1) // m) * m


def glu_kernel(x_ref, w_ref, b_ref, o_ref, *, approx_gate, precision):
    # x block: (TM, D); w block: (2, D, TN) = [w1^T ; w2^T]; b block: (2, 1, TN)
    x = x_ref[...].astype(w_ref.dtype)          # no-op when dtypes already match
    a = jnp.dot(x, w_ref[0], preferred_element_type=jnp.float32,
                precision=precision) + b_ref[0]
    g = jnp.dot(x, w_ref[1], preferred_element_type=jnp.float32,
                precision=precision) + b_ref[1]
    # sigmoid(g) = 1 / (1 + exp(-g)); exp is EUP, rcp rides the EUP slot when
    # approx_gate=True (off by default to keep full f32 accuracy).
    z = jnp.exp(-g)
    gate = pl.reciprocal(1.0 + z, approx=approx_gate)
    o_ref[...] = (a * gate).astype(o_ref.dtype)


def glu_prepare_params(w1, b1, w2, b2, *, weight_dtype=None):
    """Fuse the two nn.Linear parameter sets into kernel-ready stacked arrays.

    Call ONCE at parameter-prep time (the transpose/stack costs roughly one
    full weight read+write; it must not be paid on every forward call).
    w1, w2: PyTorch-style (D_out, D_in); b1, b2: (D,).
    """
    w_dt = weight_dtype if weight_dtype is not None else w1.dtype
    w_stack = jnp.stack([w1.T, w2.T]).astype(w_dt)                  # (2, D, D)
    b_stack = jnp.stack([b1, b2]).astype(jnp.float32)[:, None, :]   # (2, 1, D)
    return w_stack, b_stack


def glu_pallas(x, w_stack, b_stack, *, approx_gate=False, precision=None):
    """x: (..., D); w_stack/b_stack from glu_prepare_params."""
    orig_shape = x.shape
    D = orig_shape[-1]
    x2d = x.reshape(-1, D)
    M = x2d.shape[0]
    assert w_stack.shape == (2, D, D), w_stack.shape
    assert b_stack.shape == (2, 1, D), b_stack.shape

    x_bytes = jnp.dtype(x.dtype).itemsize
    w_bytes = jnp.dtype(w_stack.dtype).itemsize

    # ---- per-generation VMEM budget --------------------------------------
    try:
        vmem_cap = int(pltpu.get_tpu_info().vmem_capacity_bytes)
    except Exception:
        vmem_cap = 64 * 1024 * 1024                 # v7x-safe fallback
    vmem_limit = vmem_cap * 3 // 4                  # ~96 MiB v5e/v6e, ~48 MiB v7x
    budget = int(vmem_limit * 0.9)                  # headroom for compiler scratch

    # ---- adaptive row tile: ~4 MiB of x per block -------------------------
    TM = (4 * 1024 * 1024) // max(1, x_bytes * D)
    TM = max(256, min(4096, _round_up(TM, 256)))    # MXU-friendly multiples
    TM = max(8, min(TM, _round_up(M, 8)))           # never (much) beyond M

    def fits(tm, tn, w_bufs):
        need = 2 * tm * D * x_bytes                 # x blocks (double-buffered)
        need += 2 * tm * tn * x_bytes               # out blocks (double-buffered)
        need += w_bufs * 2 * D * tn * w_bytes       # stacked weight blocks
        need += w_bufs * 2 * tn * 4                 # stacked bias blocks (f32)
        need += 3 * tm * tn * 4                     # f32 a/g/prod intermediates
        return need <= budget

    # ---- output-feature (N) tiling: resident weights when they fit --------
    if fits(TM, D, 1):
        TN, w_resident = D, True                    # whole weight stays in VMEM
    else:
        w_resident = False
        TN = 128
        for cand in (1024, 512, 256):
            if cand < D and fits(TM, cand, 2):
                TN = cand
                break
        while not fits(TM, TN, 2) and TM > 256:     # last resort: shrink rows
            TM = max(256, _round_up(TM // 2, 256))

    nM = pl.cdiv(M, TM)
    nN = pl.cdiv(D, TN)

    # Pad only the (small) weight/bias arrays when streaming over N tiles;
    # activations are never padded or copied.
    Nw = nN * TN
    if Nw != D:
        w_stack = jnp.pad(w_stack, ((0, 0), (0, 0), (0, Nw - D)))
        b_stack = jnp.pad(b_stack, ((0, 0), (0, 0), (0, Nw - D)))

    def _wspec(shape):
        imap = lambda i, j: (0, 0, j)
        if w_resident:
            # Constant index_map -> nothing to pipeline: single buffer halves
            # the resident footprint (critical near the VMEM limit on v7x).
            try:
                return pl.BlockSpec(shape, imap, pipeline_mode=pl.Buffered(1))
            except TypeError:                       # jax without pipeline_mode
                pass
        return pl.BlockSpec(shape, imap)            # streamed: default 2 buffers

    kernel = functools.partial(glu_kernel, approx_gate=approx_gate,
                               precision=precision)
    out = pl.pallas_call(
        kernel,
        out_shape=jax.ShapeDtypeStruct((M, D), x.dtype),
        grid=(nM, nN),
        in_specs=[
            pl.BlockSpec((TM, D), lambda i, j: (i, 0)),   # x: resident across j
            _wspec((2, D, TN)),                           # stacked [w1^T; w2^T]
            _wspec((2, 1, TN)),                           # stacked bias (f32)
        ],
        out_specs=pl.BlockSpec((TM, TN), lambda i, j: (i, j)),
        compiler_params=pltpu.CompilerParams(
            dimension_semantics=("parallel", "arbitrary"),
            vmem_limit_bytes=vmem_limit,
        ),
    )(x2d, w_stack, b_stack)

    return out.reshape(orig_shape)


if __name__ == "__main__":
    key = jax.random.PRNGKey(0)
    k_x, k_w1, k_b1, k_w2, k_b2 = jax.random.split(key, 5)

    batch, seq, size = 2, 8, 32          # GLU(size=32), input (batch, seq, size)

    # deterministic PyTorch nn.Linear-style init: uniform(-1/sqrt(in), 1/sqrt(in))
    bound = 1.0 / (size ** 0.5)
    w1 = jax.random.uniform(k_w1, (size, size), jnp.float32, -bound, bound)
    b1 = jax.random.uniform(k_b1, (size,), jnp.float32, -bound, bound)
    w2 = jax.random.uniform(k_w2, (size, size), jnp.float32, -bound, bound)
    b2 = jax.random.uniform(k_b2, (size,), jnp.float32, -bound, bound)
    x = jax.random.normal(k_x, (batch, seq, size), jnp.float32)

    # parameter prep happens once, outside the per-call hot path
    w_stack, b_stack = glu_prepare_params(w1, b1, w2, b2)

    out = glu_pallas(x, w_stack, b_stack)
    out = jax.block_until_ready(out)

    ref = (x @ w1.T + b1) * jax.nn.sigmoid(x @ w2.T + b2)
    assert out.shape == ref.shape, (out.shape, ref.shape)
    assert jnp.allclose(out, ref, atol=1e-5, rtol=1e-5), "mismatch vs JAX reference"

    print("KERNEL_OK")
</pallas_src>

<mosaic_0001>
module attributes {stable_mosaic.version = 11 : i64} {
  func.func @glu_kernel(%arg0: i32, %arg1: i32, %arg2: memref<16x32xf32, #tpu.memory_space<vmem>>, %arg3: memref<2x32x32xf32, #tpu.memory_space<vmem>>, %arg4: memref<2x1x32xf32, #tpu.memory_space<vmem>>, %arg5: memref<16x32xf32, #tpu.memory_space<vmem>>) attributes {dimension_semantics = [#tpu.dimension_semantics<parallel>, #tpu.dimension_semantics<arbitrary>], iteration_bounds = array<i64: 1, 1>, scalar_prefetch = 0 : i64, scratch_operands = 0 : i64, tpu.core_type = #tpu.core_type<tc>, window_params = [{transform_indices = @transform_0, window_bounds = array<i64: 16, 32>}, {pipeline_mode = #tpu.pipeline_mode<synchronous>, transform_indices = @transform_1, window_bounds = array<i64: 2, 32, 32>}, {pipeline_mode = #tpu.pipeline_mode<synchronous>, transform_indices = @transform_2, window_bounds = array<i64: 2, 1, 32>}, {transform_indices = @transform_3, window_bounds = array<i64: 16, 32>}]} {
    %c0 = arith.constant 0 : index
    %c0_0 = arith.constant 0 : index
    %0 = vector.load %arg2[%c0, %c0_0] : memref<16x32xf32, #tpu.memory_space<vmem>>, vector<16x32xf32>
    %c0_1 = arith.constant 0 : index
    %c0_2 = arith.constant 0 : index
    %c0_3 = arith.constant 0 : index
    %1 = vector.load %arg3[%c0_1, %c0_2, %c0_3] : memref<2x32x32xf32, #tpu.memory_space<vmem>>, vector<1x32x32xf32>
    %2 = vector.shape_cast %1 : vector<1x32x32xf32> to vector<32x32xf32>
    %cst = arith.constant dense<0.000000e+00> : vector<16x32xf32>
    %3 = tpu.matmul %0, %2, %cst {dimension_numbers = #tpu.dot_dimension_numbers<[1], [0], [0], [1], [0, 0, 1, 1], [], []>} : vector<16x32xf32>, vector<32x32xf32>, vector<16x32xf32> -> vector<16x32xf32>
    %c0_4 = arith.constant 0 : index
    %c0_5 = arith.constant 0 : index
    %c0_6 = arith.constant 0 : index
    %4 = vector.load %arg4[%c0_4, %c0_5, %c0_6] : memref<2x1x32xf32, #tpu.memory_space<vmem>>, vector<1x1x32xf32>
    %5 = vector.shape_cast %4 : vector<1x1x32xf32> to vector<1x32xf32>
    %6 = vector.broadcast %5 : vector<1x32xf32> to vector<16x32xf32>
    %7 = arith.addf %3, %6 : vector<16x32xf32>
    %c1 = arith.constant 1 : index
    %c0_7 = arith.constant 0 : index
    %c0_8 = arith.constant 0 : index
    %8 = vector.load %arg3[%c1, %c0_7, %c0_8] : memref<2x32x32xf32, #tpu.memory_space<vmem>>, vector<1x32x32xf32>
    %9 = vector.shape_cast %8 : vector<1x32x32xf32> to vector<32x32xf32>
    %cst_9 = arith.constant dense<0.000000e+00> : vector<16x32xf32>
    %10 = tpu.matmul %0, %9, %cst_9 {dimension_numbers = #tpu.dot_dimension_numbers<[1], [0], [0], [1], [0, 0, 1, 1], [], []>} : vector<16x32xf32>, vector<32x32xf32>, vector<16x32xf32> -> vector<16x32xf32>
    %c1_10 = arith.constant 1 : index
    %c0_11 = arith.constant 0 : index
    %c0_12 = arith.constant 0 : index
    %11 = vector.load %arg4[%c1_10, %c0_11, %c0_12] : memref<2x1x32xf32, #tpu.memory_space<vmem>>, vector<1x1x32xf32>
    %12 = vector.shape_cast %11 : vector<1x1x32xf32> to vector<1x32xf32>
    %13 = vector.broadcast %12 : vector<1x32xf32> to vector<16x32xf32>
    %14 = arith.addf %10, %13 : vector<16x32xf32>
    %cst_13 = arith.constant 0.000000e+00 : f32
    %15 = vector.broadcast %cst_13 : f32 to vector<16x32xf32>
    %16 = arith.subf %15, %14 : vector<16x32xf32>
    %17 = math.exp %16 : vector<16x32xf32>
    %cst_14 = arith.constant 1.000000e+00 : f32
    %18 = vector.broadcast %cst_14 : f32 to vector<16x32xf32>
    %19 = arith.addf %18, %17 : vector<16x32xf32>
    %20 = tpu.reciprocal %19 : vector<16x32xf32> -> vector<16x32xf32>
    %21 = arith.mulf %7, %20 : vector<16x32xf32>
    %c0_15 = arith.constant 0 : index
    %c0_16 = arith.constant 0 : index
    %22 = vector.load %arg5[%c0_15, %c0_16] : memref<16x32xf32, #tpu.memory_space<vmem>>, vector<16x32xf32>
    tpu.vector_store %arg5[%c0_15, %c0_16], %21 {strides = array<i32>} : memref<16x32xf32, #tpu.memory_space<vmem>>, vector<16x32xf32>,
    return
  }
  func.func @transform_0(%arg0: i32, %arg1: i32) -> (i32, i32) {
    %c0_i32 = arith.constant 0 : i32
    %c0_i32_0 = arith.constant 0 : i32
    return %arg0, %c0_i32 : i32, i32
  }
  func.func @transform_1(%arg0: i32, %arg1: i32) -> (i32, i32, i32) {
    %c0_i32 = arith.constant 0 : i32
    %c0_i32_0 = arith.constant 0 : i32
    %c0_i32_1 = arith.constant 0 : i32
    return %c0_i32, %c0_i32_0, %arg1 : i32, i32, i32
  }
  func.func @transform_2(%arg0: i32, %arg1: i32) -> (i32, i32, i32) {
    %c0_i32 = arith.constant 0 : i32
    %c0_i32_0 = arith.constant 0 : i32
    %c0_i32_1 = arith.constant 0 : i32
    return %c0_i32, %c0_i32_0, %arg1 : i32, i32, i32
  }
  func.func @transform_3(%arg0: i32, %arg1: i32) -> (i32, i32) {
    %c0_i32 = arith.constant 0 : i32
    return %arg0, %arg1 : i32, i32
  }
}

</mosaic_0001>

<llo_original>
// kernel: tpu_custom_call.1
$region0: #{tpu_custom_call.1}
  #allocation0 [shape = 'u32[]', space=smem, size = 0x4, offset = 0x4, fixed_abs, tag = 'smem constant byte address 0x4 - core index']
  #allocation1 [shape = 'u32[144,128]{1,0:T(1,128)}', space=vmem, size = 0x12000, scoped, tag = 'internal scratch']
  %s0 = inlined_call_operand.hbm [shape: f32[16,32], index: 0, kind: input, shape index: {}]
  %s1 = inlined_call_operand.hbm [shape: f32[2,32,32], index: 1, kind: input, shape index: {}]
  %s2 = inlined_call_operand.vmem [shape: f32[2,1,32], index: 2, kind: input, shape index: {}]
  %s3 = inlined_call_operand.hbm [shape: f32[16,32], index: 3, kind: output, shape index: {}]
  %s4 = sld [smem:[#allocation0]]
  $region30: #{tpu_custom_call.1} parent=0
    _
  %s6 = ssub.s32 1, %s4
  %s7 = scalar_select 0, %s6, %s4
  $region1: #{tpu_custom_call.1} parent=0
    #allocation2 [shape = 'u8[8192]{0}', space=vmem, size = 0x2000, scoped, tag = 'input window, operand 0, single buffered']
    #allocation3 [shape = 's32[1]{0}', space=sflag, size = 0x4, scoped, tag = 'scoped memory for tpu_custom_call.1']
    #allocation4 [shape = 's32[1]{0}', space=sflag, size = 0x4, scoped, tag = 'scoped memory for tpu_custom_call.1']
    #allocation5 [shape = 'u8[32768]{0}', space=vmem, size = 0x8000, scoped, tag = 'input window, operand 1, single buffered']
    #allocation6 [shape = 's32[1]{0}', space=sflag, size = 0x4, scoped, tag = 'scoped memory for tpu_custom_call.1']
    #allocation7 [shape = 'u8[8192]{0}', space=vmem, size = 0x2000, scoped, tag = 'output window, operand 0, single buffered']
    %8 = vsyncpa [#allocation3], 0
    %9 = vsyncpa [#allocation6], 0
    %10 = vsyncpa [#allocation4], 0
    // Predicated region
    $region2: #{tpu_custom_call.1} parent=1 // pred_check
      _
    $region3: #{tpu_custom_call.1} parent=1 // pred_check_branch
      %12 = sbr.rel (0) target = $region5
    $region4: #{tpu_custom_call.1} parent=1 // pred_region
      %s14 = ssub.s32 256, 256
      %15 = vsyncadd [#allocation3], %s14
      %s16 = sshll.u32 [#allocation2], 4
      %s17 = int_to_ptr.vmem [resolvable:$true] %s16
      %22 = dma.hbm_to_vmem [thread:$0]  %s0, 256, %s17, [#allocation3], 128, 128, 8
    $region5: #{tpu_custom_call.1} parent=1 // pred_fallthru
      _
    // Predicated region
    $region6: #{tpu_custom_call.1} parent=1 // pred_check
      _
    $region7: #{tpu_custom_call.1} parent=1 // pred_check_branch
      %24 = sbr.rel (0) target = $region9
    $region8: #{tpu_custom_call.1} parent=1 // pred_region
      %s26 = ssub.s32 1024, 1024
      %27 = vsyncadd [#allocation6], %s26
      %s28 = sshll.u32 [#allocation5], 4
      %s29 = int_to_ptr.vmem [resolvable:$true] %s28
      %34 = dma.hbm_to_vmem [thread:$0]  %s1, 1024, %s29, [#allocation6], 128, 128, 8
    $region9: #{tpu_custom_call.1} parent=1 // pred_fallthru
      _
    // Predicated region
    $region10: #{tpu_custom_call.1} parent=1 // pred_check
      _
    $region11: #{tpu_custom_call.1} parent=1 // pred_check_branch
      %36 = sbr.rel (0) target = $region13
    $region12: #{tpu_custom_call.1} parent=1 // pred_region
      _
    $region13: #{tpu_custom_call.1} parent=1 // pred_fallthru
      _
    // Predicated region
    $region14: #{tpu_custom_call.1} parent=1 // pred_check
      _
    $region15: #{tpu_custom_call.1} parent=1 // pred_check_branch
      %38 = sbr.rel (0) target = $region17
    $region16: #{tpu_custom_call.1} parent=1 // pred_region
      %39 = dma.done [#allocation3], 256
    $region17: #{tpu_custom_call.1} parent=1 // pred_fallthru
      _
    // Predicated region
    $region18: #{tpu_custom_call.1} parent=1 // pred_check
      _
    $region19: #{tpu_custom_call.1} parent=1 // pred_check_branch
      %41 = sbr.rel (0) target = $region21
    $region20: #{tpu_custom_call.1} parent=1 // pred_region
      %42 = dma.done [#allocation6], 1024
    $region21: #{tpu_custom_call.1} parent=1 // pred_fallthru
      _
    %v43 = vld [vmem:[#allocation2] sm:$0xff]
    %v44 = vld [vmem:[#allocation2 + $0x8] sm:$0xff]
    %v45 = vld [vmem:[#allocation5] sm:$0xff]
    %v46 = vld [vmem:[#allocation5 + $0x8] sm:$0xff]
    %v47 = vld [vmem:[#allocation5 + $0x10] sm:$0xff]
    %v48 = vld [vmem:[#allocation5 + $0x18] sm:$0xff]
    %v49 = vld [vmem:[%s2] sm:$0x1]
    %v51 = vlaneseq
    %v52 = vshrl.u32 %v51, 7
    %v53 = vsub.s32 0, %v52
    %v54 = vrot.slane %v49, %v53
    %vm56 = vcmask 261120
    %v58 = vsel %vm56, %v43, 0
    %v61 = vsel %vm56, %v44, 0
    %63 = vmatprep.subr.mxu0 0.0
    %64 = vmatpush1.msra.mxu0 %v45
    %65 = vmatprep.subr.mxu0 0.0
    %66 = vmatpush1.msra.mxu0 %v46
    %67 = vmatprep.subr.mxu0 0.0
    %68 = vmatpush1.msra.mxu0 %v47
    %69 = vmatprep.subr.mxu0 0.0
    %70 = vmatpush1.msra.mxu0 %v48
    %71 = vmatprep.subr.mxu0 0.0
    %72 = vmatpush1.msra.mxu0 0.0
    %73 = vmatprep.subr.mxu0 0.0
    %74 = vmatpush1.msra.mxu0 0.0
    %75 = vmatprep.subr.mxu0 0.0
    %76 = vmatpush1.msra.mxu0 0.0
    %77 = vmatprep.subr.mxu0 0.0
    %78 = vmatpush1.msra.mxu0 0.0
    %79 = vmatprep.subr.mxu0 0.0
    %80 = vmatpush1.msra.mxu0 0.0
    %81 = vmatprep.subr.mxu0 0.0
    %82 = vmatpush1.msra.mxu0 0.0
    %83 = vmatprep.subr.mxu0 0.0
    %84 = vmatpush1.msra.mxu0 0.0
    %85 = vmatprep.subr.mxu0 0.0
    %86 = vmatpush1.msra.mxu0 0.0
    %87 = vmatprep.subr.mxu0 0.0
    %88 = vmatpush1.msra.mxu0 0.0
    %89 = vmatprep.subr.mxu0 0.0
    %90 = vmatpush1.msra.mxu0 0.0
    %91 = vmatprep.subr.mxu0 0.0
    %92 = vmatpush1.msra.mxu0 0.0
    %93 = vmatprep.subr.mxu0 0.0
    %94 = vmatpush1.msra.mxu0 0.0
    %95 = vmatprep.subr.mxu0 0.0
    %96 = vmatpush1.msra.mxu0 0.0
    %97 = vmatprep.subr.mxu0 0.0
    %98 = vmatpush1.msra.mxu0 0.0
    %99 = vmatprep.subr.mxu0 0.0
    %100 = vmatpush1.msra.mxu0 0.0
    %101 = vmatprep.subr.mxu0 0.0
    %102 = vmatpush1.msra.mxu0 0.0
    %103 = vmatprep.subr.mxu0 0.0
    %104 = vmatpush1.msra.mxu0 0.0
    %105 = vmatprep.subr.mxu0 0.0
    %106 = vmatpush1.msra.mxu0 0.0
    %107 = vmatprep.subr.mxu0 0.0
    %108 = vmatpush1.msra.mxu0 0.0
    %109 = vmatprep.subr.mxu0 0.0
    %110 = vmatpush1.msra.mxu0 0.0
    %111 = vmatprep.subr.mxu0 0.0
    %112 = vmatpush1.msra.mxu0 0.0
    %113 = vmatprep.subr.mxu0 0.0
    %114 = vmatpush1.msra.mxu0 0.0
    %115 = vmatprep.subr.mxu0 0.0
    %116 = vmatpush1.msra.mxu0 0.0
    %117 = vmatprep.subr.mxu0 0.0
    %118 = vmatpush1.msra.mxu0 0.0
    %119 = vmatprep.subr.mxu0 0.0
    %120 = vmatpush1.msra.mxu0 0.0
    %121 = vmatprep.subr.mxu0 0.0
    %122 = vmatpush1.msra.mxu0 0.0
    %123 = vmatprep.subr.mxu0 0.0
    %124 = vmatpush1.msra.mxu0 0.0
    %125 = vmatprep.subr.mxu0 0.0
    %126 = vmatpush1.msra.mxu0 0.0
    %127 = vmatprep.mubr.f32.mxu0 0.0
    %128 = vmatmul.mubr.f32.gmra.mrb[0].mxu0 %v58
    %v129 = vpop.f32.mrb[0].mxu0
    %v130 = vadd.f32 %v54, %v129
    %v131 = vpop.f32.mrb[0].mxu0
    %132 = vmatprep.mubr.f32.mxu0 0.0
    %133 = vmatmul.mubr.f32.gmra.mrb[0].mxu0 %v61
    %v134 = vpop.f32.mrb[0].mxu0
    %v135 = vadd.f32 %v54, %v134
    %v136 = vpop.f32.mrb[0].mxu0
    %137 = vdwg.mxu0
    %s138 = scalar_lea.vmem [#allocation5], 32
    %v139 = vld [vmem:[%s138] sm:$0xff]
    %v140 = vld [vmem:[%s138 + $0x8] sm:$0xff]
    %v141 = vld [vmem:[%s138 + $0x10] sm:$0xff]
    %v142 = vld [vmem:[%s138 + $0x18] sm:$0xff]
    %s143 = scalar_lea.vmem %s2, 1
    %v144 = vld [vmem:[%s143] sm:$0x1]
    %v146 = vlaneseq
    %v147 = vshrl.u32 %v146, 7
    %v148 = vsub.s32 0, %v147
    %v149 = vrot.slane %v144, %v148
    %151 = vmatprep.subr.mxu0 0.0
    %152 = vmatpush1.msra.mxu0 %v139
    %153 = vmatprep.subr.mxu0 0.0
    %154 = vmatpush1.msra.mxu0 %v140
    %155 = vmatprep.subr.mxu0 0.0
    %156 = vmatpush1.msra.mxu0 %v141
    %157 = vmatprep.subr.mxu0 0.0
    %158 = vmatpush1.msra.mxu0 %v142
    %159 = vmatprep.subr.mxu0 0.0
    %160 = vmatpush1.msra.mxu0 0.0
    %161 = vmatprep.subr.mxu0 0.0
    %162 = vmatpush1.msra.mxu0 0.0
    %163 = vmatprep.subr.mxu0 0.0
    %164 = vmatpush1.msra.mxu0 0.0
    %165 = vmatprep.subr.mxu0 0.0
    %166 = vmatpush1.msra.mxu0 0.0
    %167 = vmatprep.subr.mxu0 0.0
    %168 = vmatpush1.msra.mxu0 0.0
    %169 = vmatprep.subr.mxu0 0.0
    %170 = vmatpush1.msra.mxu0 0.0
    %171 = vmatprep.subr.mxu0 0.0
    %172 = vmatpush1.msra.mxu0 0.0
    %173 = vmatprep.subr.mxu0 0.0
    %174 = vmatpush1.msra.mxu0 0.0
    %175 = vmatprep.subr.mxu0 0.0
    %176 = vmatpush1.msra.mxu0 0.0
    %177 = vmatprep.subr.mxu0 0.0
    %178 = vmatpush1.msra.mxu0 0.0
    %179 = vmatprep.subr.mxu0 0.0
    %180 = vmatpush1.msra.mxu0 0.0
    %181 = vmatprep.subr.mxu0 0.0
    %182 = vmatpush1.msra.mxu0 0.0
    %183 = vmatprep.subr.mxu0 0.0
    %184 = vmatpush1.msra.mxu0 0.0
    %185 = vmatprep.subr.mxu0 0.0
    %186 = vmatpush1.msra.mxu0 0.0
    %187 = vmatprep.subr.mxu0 0.0
    %188 = vmatpush1.msra.mxu0 0.0
    %189 = vmatprep.subr.mxu0 0.0
    %190 = vmatpush1.msra.mxu0 0.0
    %191 = vmatprep.subr.mxu0 0.0
    %192 = vmatpush1.msra.mxu0 0.0
    %193 = vmatprep.subr.mxu0 0.0
    %194 = vmatpush1.msra.mxu0 0.0
    %195 = vmatprep.subr.mxu0 0.0
    %196 = vmatpush1.msra.mxu0 0.0
    %197 = vmatprep.subr.mxu0 0.0
    %198 = vmatpush1.msra.mxu0 0.0
    %199 = vmatprep.subr.mxu0 0.0
    %200 = vmatpush1.msra.mxu0 0.0
    %201 = vmatprep.subr.mxu0 0.0
    %202 = vmatpush1.msra.mxu0 0.0
    %203 = vmatprep.subr.mxu0 0.0
    %204 = vmatpush1.msra.mxu0 0.0
    %205 = vmatprep.subr.mxu0 0.0
    %206 = vmatpush1.msra.mxu0 0.0
    %207 = vmatprep.subr.mxu0 0.0
    %208 = vmatpush1.msra.mxu0 0.0
    %209 = vmatprep.subr.mxu0 0.0
    %210 = vmatpush1.msra.mxu0 0.0
    %211 = vmatprep.subr.mxu0 0.0
    %212 = vmatpush1.msra.mxu0 0.0
    %213 = vmatprep.subr.mxu0 0.0
    %214 = vmatpush1.msra.mxu0 0.0
    %215 = vmatprep.mubr.f32.mxu0 0.0
    %216 = vmatmul.mubr.f32.gmra.mrb[0].mxu0 %v58
    %v217 = vpop.f32.mrb[0].mxu0
    %v218 = vadd.f32 %v149, %v217
    %v219 = vpop.f32.mrb[0].mxu0
    %220 = vmatprep.mubr.f32.mxu0 0.0
    %221 = vmatmul.mubr.f32.gmra.mrb[0].mxu0 %v61
    %v222 = vpop.f32.mrb[0].mxu0
    %v223 = vadd.f32 %v149, %v222
    %v224 = vpop.f32.mrb[0].mxu0
    %225 = vdwg.mxu0
    %v226 = vsub.f32 0.0, %v218
    %v227 = vsub.f32 0.0, %v223
    %v228 = vmul.f32 %v226, 1.442695
    %v229 = vpow.pop %v228
    %v230 = vmul.f32 %v227, 1.442695
    %v231 = vpow.pop %v230
    %v232 = vadd.f32 %v229, 1.0
    %v233 = vadd.f32 %v231, 1.0
    %v234 = vrcp.pop %v232
    %v235 = vrcp.pop %v233
    %v236 = vmul.f32 %v130, %v234
    %v237 = vmul.f32 %v135, %v235
    %238 = vst.msk [vmem:[#allocation7] sm:$0xff] %vm56, %v236
    %239 = vst.msk [vmem:[#allocation7 + $0x8] sm:$0xff] %vm56, %v237
    // Predicated region
    $region22: #{tpu_custom_call.1} parent=1 // pred_check
      _
    $region23: #{tpu_custom_call.1} parent=1 // pred_check_branch
      %241 = sbr.rel (0) target = $region25
    $region24: #{tpu_custom_call.1} parent=1 // pred_region
      %s243 = ssub.s32 256, 256
      %244 = vsyncadd [#allocation4], %s243
      %s245 = sshll.u32 [#allocation7], 4
      %s246 = int_to_ptr.vmem [resolvable:$true] %s245
      %251 = dma.vmem_to_hbm [thread:$0]  %s246, 256, %s3, [#allocation4], 128, 128, 8
    $region25: #{tpu_custom_call.1} parent=1 // pred_fallthru
      _
    // Predicated region
    $region26: #{tpu_custom_call.1} parent=1 // pred_check
      _
    $region27: #{tpu_custom_call.1} parent=1 // pred_check_branch
      %253 = sbr.rel (0) target = $region29
    $region28: #{tpu_custom_call.1} parent=1 // pred_region
      %254 = dma.done [#allocation4], 256
    $region29: #{tpu_custom_call.1} parent=1 // pred_fallthru
      _
    %255 = vsyncpa [#allocation3], 1
    %256 = vsyncpa [#allocation6], 1
    %257 = vsyncpa [#allocation4], 1

</llo_original>
